<compile_context>
chip_gen: v5e
topology: v5e:2x2
jax: 0.10.0
libtpu: 0.0.40
codegen_flags: <defaults>
</compile_context>

<pallas_src>
import functools

import jax
import jax.numpy as jnp
from jax.experimental import pallas as pl
from jax.experimental.pallas import tpu as pltpu


# --------------------------------------------------------------------------
# Phase 1: sequence-wide input projection  GI = X @ W_ih_packed + b_gi
# --------------------------------------------------------------------------
def _input_proj_kernel(x_ref, w_ref, b_ref, gi_ref):
    # x: (S_pad, E)  w: (E, 3H)  b: (1, 3H) f32  gi: (S_pad, 3H) f32
    gi = jnp.dot(x_ref[...], w_ref[...], preferred_element_type=jnp.float32)
    gi_ref[...] = gi + b_ref[...]


# --------------------------------------------------------------------------
# Phase 2: serial GRU recurrence, U timesteps per grid iteration
# --------------------------------------------------------------------------
def _gru_recurrence_kernel(gi_ref,      # (U, 3H) f32  precomputed input proj
                           w_hh_ref,    # (H, 3H)      recurrent weight (resident)
                           h0_ref,      # (1, H)       initial hidden (resident)
                           b_hn_ref,    # (1, H)  f32  hidden bias of n gate
                           out_ref,     # (U, H)  f32  per-step outputs (staged)
                           h_scratch,   # VMEM (1, H) f32 running hidden state
                           *, seq_len, chunk):
    c = pl.program_id(0)
    H = w_hh_ref.shape[0]

    @pl.when(c == 0)
    def _():
        h_scratch[...] = h0_ref[...].astype(jnp.float32)

    w_hh = w_hh_ref[...]            # load once per chunk, stays in vregs/VMEM
    b_hn = b_hn_ref[...]            # (1, H) f32
    h_init = h_scratch[...]         # (1, H) f32 carried state

    mask_needed = (seq_len % chunk) != 0   # static: only traced if padding exists

    def step(i, h):
        gi = gi_ref[pl.ds(i, 1), :]                              # (1, 3H) f32
        gh = jnp.dot(h.astype(w_hh.dtype), w_hh,
                     preferred_element_type=jnp.float32)         # (1, 3H)
        rz = jax.nn.sigmoid(gi[:, :2 * H] + gh[:, :2 * H])       # packed r|z
        r = rz[:, :H]
        z = rz[:, H:]
        n = jnp.tanh(gi[:, 2 * H:] + r * (gh[:, 2 * H:] + b_hn))
        h_new = (1.0 - z) * n + z * h                            # f32
        if mask_needed:
            # Padded tail steps must not advance the hidden state.
            m = (c * chunk + i < seq_len).astype(jnp.float32)
            h_new = m * h_new + (1.0 - m) * h
        out_ref[pl.ds(i, 1), :] = h_new.astype(out_ref.dtype)    # VMEM store
        return h_new

    h_final = jax.lax.fori_loop(0, chunk, step, h_init, unroll=True)
    h_scratch[...] = h_final


def _round_up(n, m):
    return ((n + m - 1) // m) * m


def encoder_rnn_encode(tokens, hidden, params):
    """Run embedding + GRU over a whole token sequence.

    tokens: int (S,); hidden: (1, 1, H).
    Returns (outputs (S, 1, H) f32, hidden (1, 1, H) f32) — identical to
    calling EncoderRNN.forward S times and stacking the outputs."""
    emb = params["embedding"]        # (V, E)
    w_ih = params["w_ih"]            # (E, 3H)  gates packed along N: [r|z|n]
    w_hh = params["w_hh"]            # (H, 3H)
    b_gi = params["b_gi"]            # (1, 3H) f32 (b_ir+b_hr | b_iz+b_hz | b_in)
    b_hn = params["b_hn"]            # (1, H)  f32

    V, E = emb.shape
    H = w_hh.shape[0]
    S = int(tokens.shape[0])

    # Chunking: amortize per-grid-step pipeline overhead over many timesteps;
    # for moderate S run the whole sequence in a single grid step.
    if S <= 512:
        U = max(8, _round_up(S, 8))
        S_pad = U
    else:
        U = 64
        S_pad = _round_up(S, U)
    num_chunks = S_pad // U

    tok = jnp.pad(tokens.astype(jnp.int32).reshape(S), (0, S_pad - S))
    x = jnp.take(emb, tok, axis=0)                 # (S_pad, E) XLA gather

    # Phase 1: one MXU-shaped matmul for the whole sequence (not on the
    # serial critical path).  Full-array blocks; trivially VMEM-resident.
    gi = pl.pallas_call(
        _input_proj_kernel,
        out_shape=jax.ShapeDtypeStruct((S_pad, 3 * H), jnp.float32),
    )(x, w_ih, b_gi)

    h0 = jnp.reshape(hidden, (1, H)).astype(jnp.float32)

    witem = jnp.dtype(w_hh.dtype).itemsize
    cost = pl.CostEstimate(
        flops=int(S_pad * (2 * H * 3 * H + 12 * H)),
        transcendentals=int(S_pad * 3 * H),
        bytes_accessed=int(H * 3 * H * witem          # recurrent weight (once)
                           + S_pad * 3 * H * 4        # GI rows
                           + S_pad * H * 4            # outputs
                           + 2 * H * 4),              # h0 + b_hn
    )

    out = pl.pallas_call(
        functools.partial(_gru_recurrence_kernel, seq_len=S, chunk=U),
        out_shape=jax.ShapeDtypeStruct((S_pad, H), jnp.float32),
        grid=(num_chunks,),
        in_specs=[
            pl.BlockSpec((U, 3 * H), lambda c: (c, 0)),   # GI chunk (pipelined)
            pl.BlockSpec((H, 3 * H), lambda c: (0, 0)),   # W_hh resident
            pl.BlockSpec((1, H), lambda c: (0, 0)),       # h0 resident
            pl.BlockSpec((1, H), lambda c: (0, 0)),       # b_hn resident
        ],
        out_specs=pl.BlockSpec((U, H), lambda c: (c, 0)), # flushed once/chunk
        scratch_shapes=[pltpu.VMEM((1, H), jnp.float32)],
        compiler_params=pltpu.CompilerParams(
            dimension_semantics=("arbitrary",)),          # serial recurrence
        cost_estimate=cost,
    )(gi, w_hh, h0, b_hn)

    outputs = out[:S].reshape(S, 1, H)
    hidden_new = out[S - 1:S].reshape(1, 1, H)   # final hidden == last output
    return outputs, hidden_new


def encoder_rnn_forward(token, hidden, params):
    """Exact EncoderRNN.forward semantics: one token, one GRU step.
    Returns (output (1,1,H), hidden (1,1,H))."""
    outputs, hidden_new = encoder_rnn_encode(
        jnp.reshape(token, (1,)).astype(jnp.int32), hidden, params)
    return outputs, hidden_new


def init_params(key, input_size, embedding_size, hidden_size,
                param_dtype=jnp.float32):
    """Parameters matching nn.Embedding + nn.GRU, repacked for the kernels:
      embedding: (V, E)
      w_ih:      (E, 3H)  = W_ih.T   (gates along N, order [r|z|n])
      w_hh:      (H, 3H)  = W_hh.T
      b_gi:      (1, 3H) f32 = [b_ir+b_hr | b_iz+b_hz | b_in]  (folded into GI)
      b_hn:      (1, H)  f32 = b_hn  (added per step inside r*(Whn h + b_hn))
    param_dtype=bf16 uses the MXU bf16 path on v6e/v7x; gate math stays f32."""
    k_emb, k_wih, k_whh, k_bih, k_bhh = jax.random.split(key, 5)
    E, H = embedding_size, hidden_size
    bound = 1.0 / jnp.sqrt(jnp.float32(H))

    emb = jax.random.normal(k_emb, (input_size, E), jnp.float32)
    w_ih = jax.random.uniform(k_wih, (3 * H, E), jnp.float32, -bound, bound)
    w_hh = jax.random.uniform(k_whh, (3 * H, H), jnp.float32, -bound, bound)
    b_ih = jax.random.uniform(k_bih, (3 * H,), jnp.float32, -bound, bound)
    b_hh = jax.random.uniform(k_bhh, (3 * H,), jnp.float32, -bound, bound)

    b_gi = jnp.concatenate([b_ih[:H] + b_hh[:H],          # r (folded)
                            b_ih[H:2 * H] + b_hh[H:2 * H],  # z (folded)
                            b_ih[2 * H:]]).reshape(1, 3 * H)  # b_in
    b_hn = b_hh[2 * H:].reshape(1, H)

    return {
        "embedding": emb.astype(param_dtype),
        "w_ih": jnp.transpose(w_ih).astype(param_dtype),   # (E, 3H)
        "w_hh": jnp.transpose(w_hh).astype(param_dtype),   # (H, 3H)
        "b_gi": b_gi.astype(jnp.float32),
        "b_hn": b_hn.astype(jnp.float32),
    }


def _reference_encode(tokens, hidden, params):
    """Pure-JAX reference (PyTorch nn.GRU math) for correctness checks."""
    emb = params["embedding"].astype(jnp.float32)
    w_ih = params["w_ih"].astype(jnp.float32)
    w_hh = params["w_hh"].astype(jnp.float32)
    b_gi = params["b_gi"].astype(jnp.float32)
    b_hn = params["b_hn"].astype(jnp.float32)
    H = w_hh.shape[0]
    h = hidden.reshape(1, H).astype(jnp.float32)
    outs = []
    for t in range(tokens.shape[0]):
        x = emb[tokens[t]].reshape(1, -1)
        gi = x @ w_ih + b_gi
        gh = h @ w_hh
        r = jax.nn.sigmoid(gi[:, :H] + gh[:, :H])
        z = jax.nn.sigmoid(gi[:, H:2 * H] + gh[:, H:2 * H])
        n = jnp.tanh(gi[:, 2 * H:] + r * (gh[:, 2 * H:] + b_hn))
        h = (1.0 - z) * n + z * h
        outs.append(h)
    outputs = jnp.stack(outs, axis=0)            # (S, 1, H)
    return outputs, h.reshape(1, 1, H)


if __name__ == "__main__":
    vocab_size = 16
    embedding_size = 32
    hidden_size = 32
    seq_len = 8

    key = jax.random.PRNGKey(0)
    params = init_params(key, vocab_size, embedding_size, hidden_size)

    tokens = jax.random.randint(jax.random.PRNGKey(1), (seq_len,), 0,
                                vocab_size, dtype=jnp.int32)
    hidden0 = jnp.zeros((1, 1, hidden_size), jnp.float32)  # init_hidden()

    # Fused full-sequence encode (hoisted input projection + one serial call).
    outs, h_final = encoder_rnn_encode(tokens, hidden0, params)
    outs = jax.block_until_ready(outs)
    h_final = jax.block_until_ready(h_final)

    ref_outs, ref_h = _reference_encode(tokens, hidden0, params)
    assert outs.shape == (seq_len, 1, hidden_size)
    assert h_final.shape == (1, 1, hidden_size)
    assert jnp.allclose(outs, ref_outs, atol=1e-5), "fused outputs mismatch"
    assert jnp.allclose(h_final, ref_h, atol=1e-5), "fused hidden mismatch"

    # Module-exact single-step forward (EncoderRNN.forward semantics).
    out1, h1 = encoder_rnn_forward(tokens[0], hidden0, params)
    out1 = jax.block_until_ready(out1)
    h1 = jax.block_until_ready(h1)
    assert out1.shape == (1, 1, hidden_size)
    assert h1.shape == (1, 1, hidden_size)
    assert jnp.allclose(out1, ref_outs[0:1], atol=1e-5), "single-step mismatch"
    assert jnp.allclose(h1, ref_outs[0:1], atol=1e-5), "single-step hidden mismatch"

    # bf16 weight/embedding storage (v6e/v7x MXU path); gate math stays f32.
    params_bf16 = init_params(key, vocab_size, embedding_size, hidden_size,
                              param_dtype=jnp.bfloat16)
    outs_bf, h_bf = encoder_rnn_encode(tokens, hidden0, params_bf16)
    outs_bf = jax.block_until_ready(outs_bf)
    ref_bf, _ = _reference_encode(tokens, hidden0, params_bf16)
    assert jnp.allclose(outs_bf, ref_bf, atol=5e-2), "bf16 path mismatch"

    print("KERNEL_OK")
</pallas_src>

<mosaic_0001>
module attributes {stable_mosaic.version = 11 : i64} {
  func.func @_input_proj_kernel(%arg0: memref<8x32xf32, #tpu.memory_space<vmem>>, %arg1: memref<32x96xf32, #tpu.memory_space<vmem>>, %arg2: memref<1x96xf32, #tpu.memory_space<vmem>>, %arg3: memref<8x96xf32, #tpu.memory_space<vmem>>) attributes {dimension_semantics = [], scalar_prefetch = 0 : i64, scratch_operands = 0 : i64, tpu.core_type = #tpu.core_type<tc>} {
    %c0 = arith.constant 0 : index
    %c0_0 = arith.constant 0 : index
    %0 = vector.load %arg0[%c0, %c0_0] : memref<8x32xf32, #tpu.memory_space<vmem>>, vector<8x32xf32>
    %c0_1 = arith.constant 0 : index
    %c0_2 = arith.constant 0 : index
    %1 = vector.load %arg1[%c0_1, %c0_2] : memref<32x96xf32, #tpu.memory_space<vmem>>, vector<32x96xf32>
    %cst = arith.constant dense<0.000000e+00> : vector<8x96xf32>
    %2 = tpu.matmul %0, %1, %cst {dimension_numbers = #tpu.dot_dimension_numbers<[1], [0], [0], [1], [0, 0, 1, 1], [], []>} : vector<8x32xf32>, vector<32x96xf32>, vector<8x96xf32> -> vector<8x96xf32>
    %c0_3 = arith.constant 0 : index
    %c0_4 = arith.constant 0 : index
    %3 = vector.load %arg2[%c0_3, %c0_4] : memref<1x96xf32, #tpu.memory_space<vmem>>, vector<1x96xf32>
    %4 = vector.broadcast %3 : vector<1x96xf32> to vector<8x96xf32>
    %5 = arith.addf %2, %4 : vector<8x96xf32>
    %c0_5 = arith.constant 0 : index
    %c0_6 = arith.constant 0 : index
    %6 = vector.load %arg3[%c0_5, %c0_6] : memref<8x96xf32, #tpu.memory_space<vmem>>, vector<8x96xf32>
    tpu.vector_store %arg3[%c0_5, %c0_6], %5 {strides = array<i32>} : memref<8x96xf32, #tpu.memory_space<vmem>>, vector<8x96xf32>,
    return
  }
}

</mosaic_0001>

<llo_original>
// kernel: tpu_custom_call.1
$region0: #{tpu_custom_call.1}
  #allocation0 [shape = 'u32[]', space=smem, size = 0x4, offset = 0x4, fixed_abs, tag = 'smem constant byte address 0x4 - core index']
  #allocation1 [shape = 'u32[72,128]{1,0:T(1,128)}', space=vmem, size = 0x9000, scoped, tag = 'internal scratch']
  %s0 = inlined_call_operand.hbm [shape: f32[8,32], index: 0, kind: input, shape index: {}]
  %s1 = inlined_call_operand.hbm [shape: f32[32,96], index: 1, kind: input, shape index: {}]
  %s2 = inlined_call_operand.vmem [shape: f32[1,96], index: 2, kind: input, shape index: {}]
  %s3 = inlined_call_operand.hbm [shape: f32[8,96], index: 3, kind: output, shape index: {}]
  %s4 = sld [smem:[#allocation0]]
  $region30: #{tpu_custom_call.1} parent=0
    _
  %s6 = ssub.s32 1, %s4
  %s7 = scalar_select 0, %s6, %s4
  $region1: #{tpu_custom_call.1} parent=0
    #allocation2 [shape = 'u8[4096]{0}', space=vmem, size = 0x1000, scoped, tag = 'input window, operand 0, single buffered']
    #allocation3 [shape = 's32[1]{0}', space=sflag, size = 0x4, scoped, tag = 'scoped memory for tpu_custom_call.1']
    #allocation4 [shape = 's32[1]{0}', space=sflag, size = 0x4, scoped, tag = 'scoped memory for tpu_custom_call.1']
    #allocation5 [shape = 'u8[16384]{0}', space=vmem, size = 0x4000, scoped, tag = 'input window, operand 1, single buffered']
    #allocation6 [shape = 's32[1]{0}', space=sflag, size = 0x4, scoped, tag = 'scoped memory for tpu_custom_call.1']
    #allocation7 [shape = 'u8[4096]{0}', space=vmem, size = 0x1000, scoped, tag = 'output window, operand 0, single buffered']
    %8 = vsyncpa [#allocation3], 0
    %9 = vsyncpa [#allocation6], 0
    %10 = vsyncpa [#allocation4], 0
    // Predicated region
    $region2: #{tpu_custom_call.1} parent=1 // pred_check
      _
    $region3: #{tpu_custom_call.1} parent=1 // pred_check_branch
      %12 = sbr.rel (0) target = $region5
    $region4: #{tpu_custom_call.1} parent=1 // pred_region
      %14 = vsyncadd [#allocation3], 0
      %s16 = sshll.u32 %s0, 4
      %s17 = int_to_ptr.hbm [resolvable:$true] %s16
      %s18 = sshll.u32 [#allocation2], 4
      %s19 = int_to_ptr.vmem [resolvable:$true] %s18
      %21 = dma.hbm_to_vmem [thread:$0]  %s17, 128, %s19, [#allocation3]
    $region5: #{tpu_custom_call.1} parent=1 // pred_fallthru
      _
    // Predicated region
    $region6: #{tpu_custom_call.1} parent=1 // pred_check
      _
    $region7: #{tpu_custom_call.1} parent=1 // pred_check_branch
      %23 = sbr.rel (0) target = $region9
    $region8: #{tpu_custom_call.1} parent=1 // pred_region
      %25 = vsyncadd [#allocation6], 0
      %s26 = sshll.u32 %s1, 4
      %s27 = int_to_ptr.hbm [resolvable:$true] %s26
      %s28 = sshll.u32 [#allocation5], 4
      %s29 = int_to_ptr.vmem [resolvable:$true] %s28
      %34 = dma.hbm_to_vmem [thread:$0]  %s27, 512, %s29, [#allocation6], 128, 128, 8
    $region9: #{tpu_custom_call.1} parent=1 // pred_fallthru
      _
    // Predicated region
    $region10: #{tpu_custom_call.1} parent=1 // pred_check
      _
    $region11: #{tpu_custom_call.1} parent=1 // pred_check_branch
      %36 = sbr.rel (0) target = $region13
    $region12: #{tpu_custom_call.1} parent=1 // pred_region
      _
    $region13: #{tpu_custom_call.1} parent=1 // pred_fallthru
      _
    // Predicated region
    $region14: #{tpu_custom_call.1} parent=1 // pred_check
      _
    $region15: #{tpu_custom_call.1} parent=1 // pred_check_branch
      %38 = sbr.rel (0) target = $region17
    $region16: #{tpu_custom_call.1} parent=1 // pred_region
      %40 = dma.done [#allocation3], 128
    $region17: #{tpu_custom_call.1} parent=1 // pred_fallthru
      _
    // Predicated region
    $region18: #{tpu_custom_call.1} parent=1 // pred_check
      _
    $region19: #{tpu_custom_call.1} parent=1 // pred_check_branch
      %42 = sbr.rel (0) target = $region21
    $region20: #{tpu_custom_call.1} parent=1 // pred_region
      %44 = dma.done [#allocation6], 512
    $region21: #{tpu_custom_call.1} parent=1 // pred_fallthru
      _
    %v45 = vld [vmem:[#allocation2] sm:$0xff]
    %v46 = vld [vmem:[#allocation5] sm:$0xff]
    %v47 = vld [vmem:[#allocation5 + $0x8] sm:$0xff]
    %v48 = vld [vmem:[#allocation5 + $0x10] sm:$0xff]
    %v49 = vld [vmem:[#allocation5 + $0x18] sm:$0xff]
    %v50 = vld [vmem:[%s2] sm:$0x1]
    %v52 = vperm.slane %v50, 0
    %vm54 = vcmask 261120
    %v56 = vsel %vm54, %v45, 0
    %58 = vmatpush.msra.mxu0 0.0
    %59 = vmatpush.msra.mxu0 0.0
    %60 = vmatpush.msra.mxu0 0.0
    %61 = vmatpush.msra.mxu0 0.0
    %62 = vmatpush.msra.mxu0 0.0
    %63 = vmatpush.msra.mxu0 0.0
    %64 = vmatpush.msra.mxu0 0.0
    %65 = vmatpush.msra.mxu0 0.0
    %66 = vmatpush.msra.mxu0 0.0
    %67 = vmatpush.msra.mxu0 0.0
    %68 = vmatpush.msra.mxu0 0.0
    %69 = vmatpush.msra.mxu0 0.0
    %70 = vmatpush.msra.mxu0 %v49
    %71 = vmatpush.msra.mxu0 %v48
    %72 = vmatpush.msra.mxu0 %v47
    %73 = vmatpush.msra.mxu0 %v46
    %74 = vmatmul.f32.gmra.mxu0 %v56
    %v75 = vpop.f32.mrf.mxu0
    %v76 = vadd.f32 %v52, %v75
    %77 = vdwg.mxu0
    %vm78 = vcmask 785408
    %79 = vst.msk [vmem:[#allocation7] sm:$0xff] %vm78, %v76
    // Predicated region
    $region22: #{tpu_custom_call.1} parent=1 // pred_check
      _
    $region23: #{tpu_custom_call.1} parent=1 // pred_check_branch
      %81 = sbr.rel (0) target = $region25
    $region24: #{tpu_custom_call.1} parent=1 // pred_region
      %83 = vsyncadd [#allocation4], 0
      %s85 = sshll.u32 [#allocation7], 4
      %s86 = int_to_ptr.vmem [resolvable:$true] %s85
      %s87 = sshll.u32 %s3, 4
      %s88 = int_to_ptr.hbm [resolvable:$true] %s87
      %90 = dma.vmem_to_hbm [thread:$0]  %s86, 128, %s88, [#allocation4]
    $region25: #{tpu_custom_call.1} parent=1 // pred_fallthru
      _
    // Predicated region
    $region26: #{tpu_custom_call.1} parent=1 // pred_check
      _
    $region27: #{tpu_custom_call.1} parent=1 // pred_check_branch
      %92 = sbr.rel (0) target = $region29
    $region28: #{tpu_custom_call.1} parent=1 // pred_region
      %94 = dma.done [#allocation4], 128
    $region29: #{tpu_custom_call.1} parent=1 // pred_fallthru
      _
    %95 = vsyncpa [#allocation3], 1
    %96 = vsyncpa [#allocation6], 1
    %97 = vsyncpa [#allocation4], 1

</llo_original>
